<compile_context>
chip_gen: v6e
topology: v6e:2x2x1
jax: 0.10.0
libtpu: 0.0.40
codegen_flags: <defaults>
</compile_context>

<pallas_src>
import functools

import jax
import jax.numpy as jnp
import numpy as np
from jax.experimental import pallas as pl
from jax.experimental.pallas import tpu as pltpu


def _fused_emb_mlp_softmax_kernel(ids_ref, t1_ref, w2_ref, b2_ref, o_ref, *, B, S):
    """ids: (B*S,1) i32; t1: (V,H) = emb@W1^T+b1; w2: (H,O); b2: (1,O); o: (B*S,O)."""
    BS = ids_ref.shape[0]
    V = t1_ref.shape[0]
    O = o_ref.shape[1]

    # --- Fused embedding + layer_1 + bias: exact one-hot gather into the folded table. ---
    ids = ids_ref[...]                                                    # (BS, 1) int32
    vocab_iota = jax.lax.broadcasted_iota(jnp.int32, (BS, V), 1)          # (BS, V)
    onehot = (ids == vocab_iota).astype(jnp.float32)                      # (BS, V)
    h = jnp.tanh(jnp.dot(onehot, t1_ref[...],
                         preferred_element_type=jnp.float32))             # (BS, H)

    # --- layer_2 + tanh (batch folded into the matmul M dimension). ---
    y = jnp.tanh(jnp.dot(h, w2_ref[...],
                         preferred_element_type=jnp.float32) + b2_ref[...])  # (BS, O)

    # --- Softmax over the batch axis (PyTorch F.softmax no-dim default for 3-D -> dim=0).
    # Reshapes below only split/merge the leading (sublane) dim; the lane dim stays O.
    y3 = y.reshape(B, S, O)
    m = jnp.max(y3, axis=0, keepdims=True)                                # (1, S, O)
    e = jnp.exp(y3 - m)                                                   # (B, S, O)
    denom = jnp.sum(e, axis=0, keepdims=True)                             # (1, S, O)

    # Single full-block store of the lane-contiguous 2-D slab.
    o_ref[...] = (e / denom).reshape(BS, O)


def linear_model_forward(token_ids, emb_table, w1, b1, w2, b2):
    """token_ids: (B, S) int. Weights in PyTorch convention: w1 (H, E), w2 (O, H)."""
    B, S = token_ids.shape
    V, E = emb_table.shape
    H = w1.shape[0]
    O = w2.shape[0]
    BS = B * S

    # Prep: ids as a 2-D int32 column; fold embedding + layer_1 + b1 into one (V, H) table;
    # layer_2 weight pre-transposed to (in, out); bias as a (1, O) row for lane broadcast.
    ids2d = token_ids.reshape(BS, 1).astype(jnp.int32)
    t1 = (jnp.asarray(emb_table, jnp.float32) @ jnp.asarray(w1, jnp.float32).T
          + jnp.asarray(b1, jnp.float32)[None, :])                        # (V, H)
    w2_t = jnp.asarray(w2, jnp.float32).T                                 # (H, O)
    b2_2d = jnp.asarray(b2, jnp.float32).reshape(1, O)

    flops = 2 * BS * (V * H + H * O)
    transcendentals = BS * (H + 2 * O)
    bytes_accessed = 4 * (BS + V * H + H * O + O + BS * O)

    vmem = pl.BlockSpec(memory_space=pltpu.MemorySpace.VMEM)
    out2d = pl.pallas_call(
        functools.partial(_fused_emb_mlp_softmax_kernel, B=B, S=S),
        out_shape=jax.ShapeDtypeStruct((BS, O), jnp.float32),
        in_specs=[vmem] * 4,
        out_specs=vmem,
        cost_estimate=pl.CostEstimate(
            flops=flops, transcendentals=transcendentals, bytes_accessed=bytes_accessed),
    )(ids2d, t1, w2_t, b2_2d)

    return out2d.reshape(B, S, O)


def _reference(token_ids, emb_table, w1, b1, w2, b2):
    x = jnp.take(emb_table, token_ids.astype(jnp.int32), axis=0)
    h = jnp.tanh(x @ w1.T + b1)
    y = jnp.tanh(h @ w2.T + b2)
    y = y - jnp.max(y, axis=0, keepdims=True)   # softmax over dim 0 (PyTorch default for 3-D)
    e = jnp.exp(y)
    return e / jnp.sum(e, axis=0, keepdims=True)


if __name__ == "__main__":
    # Module hyperparameters (small, consistent with the nn.Module signature).
    input_size = 32   # vocab size (num_embeddings)
    emb_size = 16
    hidden_size = 32
    output_size = 16
    B, S = 2, 8       # batch, sequence length of integer token ids

    key = jax.random.PRNGKey(0)
    k_emb, k_w1, k_b1, k_w2, k_b2, k_in = jax.random.split(key, 6)

    # Deterministic parameter init (shapes follow PyTorch conventions).
    emb_table = jax.random.normal(k_emb, (input_size, emb_size), jnp.float32)
    lim1 = 1.0 / np.sqrt(emb_size)
    w1 = jax.random.uniform(k_w1, (hidden_size, emb_size), jnp.float32, -lim1, lim1)
    b1 = jax.random.uniform(k_b1, (hidden_size,), jnp.float32, -lim1, lim1)
    lim2 = 1.0 / np.sqrt(hidden_size)
    w2 = jax.random.uniform(k_w2, (output_size, hidden_size), jnp.float32, -lim2, lim2)
    b2 = jax.random.uniform(k_b2, (output_size,), jnp.float32, -lim2, lim2)

    token_ids = jax.random.randint(k_in, (B, S), 0, input_size, jnp.int32)

    out = linear_model_forward(token_ids, emb_table, w1, b1, w2, b2)
    out = jax.block_until_ready(out)

    ref = jax.block_until_ready(_reference(token_ids, emb_table, w1, b1, w2, b2))
    assert out.shape == (B, S, output_size)
    np.testing.assert_allclose(np.asarray(out), np.asarray(ref), rtol=1e-4, atol=1e-5)

    print("KERNEL_OK")
</pallas_src>

<mosaic_0001>
module attributes {stable_mosaic.version = 11 : i64} {
  func.func @_fused_emb_mlp_softmax_kernel(%arg0: memref<16x1xi32, #tpu.memory_space<vmem>>, %arg1: memref<32x32xf32, #tpu.memory_space<vmem>>, %arg2: memref<32x16xf32, #tpu.memory_space<vmem>>, %arg3: memref<1x16xf32, #tpu.memory_space<vmem>>, %arg4: memref<16x16xf32, #tpu.memory_space<vmem>>) attributes {dimension_semantics = [], scalar_prefetch = 0 : i64, scratch_operands = 0 : i64, tpu.core_type = #tpu.core_type<tc>} {
    %c0 = arith.constant 0 : index
    %c0_0 = arith.constant 0 : index
    %0 = vector.load %arg0[%c0, %c0_0] : memref<16x1xi32, #tpu.memory_space<vmem>>, vector<16x1xi32>
    %1 = tpu.iota {dimensions = array<i32: 1>} : vector<16x32xi32>
    %2 = vector.broadcast %0 : vector<16x1xi32> to vector<16x32xi32>
    %3 = arith.cmpi eq, %2, %1 : vector<16x32xi32>
    %4 = arith.extui %3 : vector<16x32xi1> to vector<16x32xi32>
    %5 = arith.sitofp %4 : vector<16x32xi32> to vector<16x32xf32>
    %c0_1 = arith.constant 0 : index
    %c0_2 = arith.constant 0 : index
    %6 = vector.load %arg1[%c0_1, %c0_2] : memref<32x32xf32, #tpu.memory_space<vmem>>, vector<32x32xf32>
    %cst = arith.constant dense<0.000000e+00> : vector<16x32xf32>
    %7 = tpu.matmul %5, %6, %cst {dimension_numbers = #tpu.dot_dimension_numbers<[1], [0], [0], [1], [0, 0, 1, 1], [], []>} : vector<16x32xf32>, vector<32x32xf32>, vector<16x32xf32> -> vector<16x32xf32>
    %8 = math.tanh %7 : vector<16x32xf32>
    %c0_3 = arith.constant 0 : index
    %c0_4 = arith.constant 0 : index
    %9 = vector.load %arg2[%c0_3, %c0_4] : memref<32x16xf32, #tpu.memory_space<vmem>>, vector<32x16xf32>
    %cst_5 = arith.constant dense<0.000000e+00> : vector<16x16xf32>
    %10 = tpu.matmul %8, %9, %cst_5 {dimension_numbers = #tpu.dot_dimension_numbers<[1], [0], [0], [1], [0, 0, 1, 1], [], []>} : vector<16x32xf32>, vector<32x16xf32>, vector<16x16xf32> -> vector<16x16xf32>
    %c0_6 = arith.constant 0 : index
    %c0_7 = arith.constant 0 : index
    %11 = vector.load %arg3[%c0_6, %c0_7] : memref<1x16xf32, #tpu.memory_space<vmem>>, vector<1x16xf32>
    %12 = vector.broadcast %11 : vector<1x16xf32> to vector<16x16xf32>
    %13 = arith.addf %10, %12 : vector<16x16xf32>
    %14 = math.tanh %13 : vector<16x16xf32>
    %15 = vector.shape_cast %14 : vector<16x16xf32> to vector<2x8x16xf32>
    %cst_8 = arith.constant dense<0xFF800000> : vector<8x16xf32>
    %16 = vector.multi_reduction <maximumf>, %15, %cst_8 [0] : vector<2x8x16xf32> to vector<8x16xf32>
    %17 = vector.shape_cast %16 : vector<8x16xf32> to vector<1x8x16xf32>
    %18 = vector.broadcast %17 : vector<1x8x16xf32> to vector<2x8x16xf32>
    %19 = arith.subf %15, %18 : vector<2x8x16xf32>
    %20 = math.exp %19 : vector<2x8x16xf32>
    %cst_9 = arith.constant dense<0.000000e+00> : vector<8x16xf32>
    %21 = vector.multi_reduction <add>, %20, %cst_9 [0] : vector<2x8x16xf32> to vector<8x16xf32>
    %22 = vector.shape_cast %21 : vector<8x16xf32> to vector<1x8x16xf32>
    %23 = vector.broadcast %22 : vector<1x8x16xf32> to vector<2x8x16xf32>
    %24 = arith.divf %20, %23 : vector<2x8x16xf32>
    %25 = vector.shape_cast %24 : vector<2x8x16xf32> to vector<16x16xf32>
    %c0_10 = arith.constant 0 : index
    %c0_11 = arith.constant 0 : index
    %26 = vector.load %arg4[%c0_10, %c0_11] : memref<16x16xf32, #tpu.memory_space<vmem>>, vector<16x16xf32>
    tpu.vector_store %arg4[%c0_10, %c0_11], %25 {strides = array<i32>} : memref<16x16xf32, #tpu.memory_space<vmem>>, vector<16x16xf32>,
    return
  }
}

</mosaic_0001>

<llo_original>
// kernel: tpu_custom_call.1
$region0: #{tpu_custom_call.1}
  #allocation0 [shape = 'u32[]', space=smem, size = 0x4, offset = 0x4, fixed_abs, tag = 'smem constant byte address 0x4 - core index']
  #allocation1 [shape = 'u32[144,128]{1,0:T(1,128)}', space=vmem, size = 0x12000, scoped, tag = 'internal scratch']
  %s0 = inlined_call_operand.vmem [shape: s32[16,1], index: 0, kind: input, shape index: {}]
  %s1 = inlined_call_operand.vmem [shape: f32[32,32], index: 1, kind: input, shape index: {}]
  %s2 = inlined_call_operand.vmem [shape: f32[32,16], index: 2, kind: input, shape index: {}]
  %s3 = inlined_call_operand.vmem [shape: f32[1,16], index: 3, kind: input, shape index: {}]
  %s4 = inlined_call_operand.hbm [shape: f32[16,16], index: 4, kind: output, shape index: {}]
  %s5 = sld [smem:[#allocation0]]
  $region26: #{tpu_custom_call.1} parent=0
    _
  %s7 = ssub.s32 1, %s5
  %s8 = scalar_select 0, %s7, %s5
  $region1: #{tpu_custom_call.1} parent=0
    #allocation2 [shape = 'u8[8192]{0}', space=vmem, size = 0x2000, scoped, tag = 'output window, operand 0, single buffered']
    #allocation3 [shape = 's32[1]{0}', space=sflag, size = 0x4, scoped, tag = 'scoped memory for tpu_custom_call.1']
    %9 = vsyncpa [#allocation3], 0
    // Predicated region
    $region2: #{tpu_custom_call.1} parent=1 // pred_check
      _
    $region3: #{tpu_custom_call.1} parent=1 // pred_check_branch
      %11 = sbr.rel (0) target = $region5
    $region4: #{tpu_custom_call.1} parent=1 // pred_region
      _
    $region5: #{tpu_custom_call.1} parent=1 // pred_fallthru
      _
    // Predicated region
    $region6: #{tpu_custom_call.1} parent=1 // pred_check
      _
    $region7: #{tpu_custom_call.1} parent=1 // pred_check_branch
      %13 = sbr.rel (0) target = $region9
    $region8: #{tpu_custom_call.1} parent=1 // pred_region
      _
    $region9: #{tpu_custom_call.1} parent=1 // pred_fallthru
      _
    // Predicated region
    $region10: #{tpu_custom_call.1} parent=1 // pred_check
      _
    $region11: #{tpu_custom_call.1} parent=1 // pred_check_branch
      %15 = sbr.rel (0) target = $region13
    $region12: #{tpu_custom_call.1} parent=1 // pred_region
      _
    $region13: #{tpu_custom_call.1} parent=1 // pred_fallthru
      _
    // Predicated region
    $region14: #{tpu_custom_call.1} parent=1 // pred_check
      _
    $region15: #{tpu_custom_call.1} parent=1 // pred_check_branch
      %17 = sbr.rel (0) target = $region17
    $region16: #{tpu_custom_call.1} parent=1 // pred_region
      _
    $region17: #{tpu_custom_call.1} parent=1 // pred_fallthru
      _
    %v18 = vld [vmem:[%s0] sm:$0xff]
    %v19 = vld [vmem:[%s0 + $0x8] sm:$0xff]
    %v20 = vlaneseq
    %v21 = vand.u32 %v20, 127
    %22 = vset.pattern.permute.xlu0 0
    %23 = vperm.xlu0 %22, %v18
    %v24 = vpop.permute.xlu0 %23
    %25 = vset.pattern.permute.xlu0 0
    %26 = vperm.xlu0 %25, %v19
    %v27 = vpop.permute.xlu0 %26
    %vm28 = vcmp.eq.s32.totalorder %v24, %v21
    %vm29 = vcmp.eq.s32.totalorder %v27, %v21
    %v30 = vsel %vm28, 1, 0
    %v31 = vsel %vm29, 1, 0
    %v32 = vcvt.s32.f32 %v30
    %v33 = vcvt.s32.f32 %v31
    %v34 = vld [vmem:[%s1] sm:$0xff]
    %v35 = vld [vmem:[%s1 + $0x8] sm:$0xff]
    %v36 = vld [vmem:[%s1 + $0x10] sm:$0xff]
    %v37 = vld [vmem:[%s1 + $0x18] sm:$0xff]
    %vm38 = vcmask 261120
    %v40 = vsel %vm38, %v32, 0
    %v43 = vsel %vm38, %v33, 0
    %45 = vmatprep.subr.mxu0 0.0
    %46 = vmatpush1.msra.mxu0 0.0
    %47 = vmatprep.subr.mxu0 0.0
    %48 = vmatpush1.msra.mxu0 0.0
    %49 = vmatprep.subr.mxu0 0.0
    %50 = vmatpush1.msra.mxu0 0.0
    %51 = vmatprep.subr.mxu0 0.0
    %52 = vmatpush1.msra.mxu0 0.0
    %53 = vmatprep.subr.mxu0 0.0
    %54 = vmatpush1.msra.mxu0 0.0
    %55 = vmatprep.subr.mxu0 0.0
    %56 = vmatpush1.msra.mxu0 0.0
    %57 = vmatprep.subr.mxu0 0.0
    %58 = vmatpush1.msra.mxu0 0.0
    %59 = vmatprep.subr.mxu0 0.0
    %60 = vmatpush1.msra.mxu0 0.0
    %61 = vmatprep.subr.mxu0 0.0
    %62 = vmatpush1.msra.mxu0 0.0
    %63 = vmatprep.subr.mxu0 0.0
    %64 = vmatpush1.msra.mxu0 0.0
    %65 = vmatprep.subr.mxu0 0.0
    %66 = vmatpush1.msra.mxu0 0.0
    %67 = vmatprep.subr.mxu0 0.0
    %68 = vmatpush1.msra.mxu0 0.0
    %69 = vmatprep.subr.mxu0 0.0
    %70 = vmatpush1.msra.mxu0 %v37
    %71 = vmatprep.subr.mxu0 0.0
    %72 = vmatpush1.msra.mxu0 %v36
    %73 = vmatprep.subr.mxu0 0.0
    %74 = vmatpush1.msra.mxu0 %v35
    %75 = vmatprep.subr.mxu0 0.0
    %76 = vmatpush1.msra.mxu0 %v34
    %77 = vmatprep.subr.mxu0 0.0
    %78 = vmatpush2.msra.mxu0 0.0
    %79 = vmatprep.subr.mxu0 0.0
    %80 = vmatpush2.msra.mxu0 0.0
    %81 = vmatprep.subr.mxu0 0.0
    %82 = vmatpush2.msra.mxu0 0.0
    %83 = vmatprep.subr.mxu0 0.0
    %84 = vmatpush2.msra.mxu0 0.0
    %85 = vmatprep.subr.mxu0 0.0
    %86 = vmatpush2.msra.mxu0 0.0
    %87 = vmatprep.subr.mxu0 0.0
    %88 = vmatpush2.msra.mxu0 0.0
    %89 = vmatprep.subr.mxu0 0.0
    %90 = vmatpush2.msra.mxu0 0.0
    %91 = vmatprep.subr.mxu0 0.0
    %92 = vmatpush2.msra.mxu0 0.0
    %93 = vmatprep.subr.mxu0 0.0
    %94 = vmatpush2.msra.mxu0 0.0
    %95 = vmatprep.subr.mxu0 0.0
    %96 = vmatpush2.msra.mxu0 0.0
    %97 = vmatprep.subr.mxu0 0.0
    %98 = vmatpush2.msra.mxu0 0.0
    %99 = vmatprep.subr.mxu0 0.0
    %100 = vmatpush2.msra.mxu0 0.0
    %101 = vmatprep.subr.mxu0 0.0
    %102 = vmatpush2.msra.mxu0 0.0
    %103 = vmatprep.subr.mxu0 0.0
    %104 = vmatpush2.msra.mxu0 0.0
    %105 = vmatprep.subr.mxu0 0.0
    %106 = vmatpush2.msra.mxu0 0.0
    %107 = vmatprep.subr.mxu0 0.0
    %108 = vmatpush2.msra.mxu0 0.0
    %109 = vmatprep.mubr.f32.mxu0 0.0
    %110 = vmatmul.mubr.f32.gmra.mxu0 %v40
    %v111 = vpop.f32.mrf.mxu0
    %v112 = vadd.f32 0.0, %v111
    %v113 = vpop.f32.mrf.mxu0
    %114 = vmatprep.mubr.f32.mxu0 0.0
    %115 = vmatmul.mubr.f32.gmra.mxu0 %v43
    %v116 = vpop.f32.mrf.mxu0
    %v117 = vadd.f32 0.0, %v116
    %v118 = vpop.f32.mrf.mxu0
    %119 = vdwg.mxu0
    %v120 = vtanh.pop %v112
    %v121 = vtanh.pop %v117
    %v122 = vld [vmem:[%s2] sm:$0xff]
    %v123 = vld [vmem:[%s2 + $0x8] sm:$0xff]
    %v124 = vld [vmem:[%s2 + $0x10] sm:$0xff]
    %v125 = vld [vmem:[%s2 + $0x18] sm:$0xff]
    %v126 = vld [vmem:[%s3] sm:$0x1]
    %v128 = vlaneseq
    %v129 = vshrl.u32 %v128, 7
    %v130 = vsub.s32 0, %v129
    %v131 = vrot.slane %v126, %v130
    %v134 = vsel %vm38, %v120, 0
    %v137 = vsel %vm38, %v121, 0
    %139 = vmatprep.subr.mxu0 0.0
    %140 = vmatpush1.msra.mxu0 0.0
    %141 = vmatprep.subr.mxu0 0.0
    %142 = vmatpush1.msra.mxu0 0.0
    %143 = vmatprep.subr.mxu0 0.0
    %144 = vmatpush1.msra.mxu0 0.0
    %145 = vmatprep.subr.mxu0 0.0
    %146 = vmatpush1.msra.mxu0 0.0
    %147 = vmatprep.subr.mxu0 0.0
    %148 = vmatpush1.msra.mxu0 0.0
    %149 = vmatprep.subr.mxu0 0.0
    %150 = vmatpush1.msra.mxu0 0.0
    %151 = vmatprep.subr.mxu0 0.0
    %152 = vmatpush1.msra.mxu0 0.0
    %153 = vmatprep.subr.mxu0 0.0
    %154 = vmatpush1.msra.mxu0 0.0
    %155 = vmatprep.subr.mxu0 0.0
    %156 = vmatpush1.msra.mxu0 0.0
    %157 = vmatprep.subr.mxu0 0.0
    %158 = vmatpush1.msra.mxu0 0.0
    %159 = vmatprep.subr.mxu0 0.0
    %160 = vmatpush1.msra.mxu0 0.0
    %161 = vmatprep.subr.mxu0 0.0
    %162 = vmatpush1.msra.mxu0 0.0
    %163 = vmatprep.subr.mxu0 0.0
    %164 = vmatpush1.msra.mxu0 %v125
    %165 = vmatprep.subr.mxu0 0.0
    %166 = vmatpush1.msra.mxu0 %v124
    %167 = vmatprep.subr.mxu0 0.0
    %168 = vmatpush1.msra.mxu0 %v123
    %169 = vmatprep.subr.mxu0 0.0
    %170 = vmatpush1.msra.mxu0 %v122
    %171 = vmatprep.subr.mxu0 0.0
    %172 = vmatpush2.msra.mxu0 0.0
    %173 = vmatprep.subr.mxu0 0.0
    %174 = vmatpush2.msra.mxu0 0.0
    %175 = vmatprep.subr.mxu0 0.0
    %176 = vmatpush2.msra.mxu0 0.0
    %177 = vmatprep.subr.mxu0 0.0
    %178 = vmatpush2.msra.mxu0 0.0
    %179 = vmatprep.subr.mxu0 0.0
    %180 = vmatpush2.msra.mxu0 0.0
    %181 = vmatprep.subr.mxu0 0.0
    %182 = vmatpush2.msra.mxu0 0.0
    %183 = vmatprep.subr.mxu0 0.0
    %184 = vmatpush2.msra.mxu0 0.0
    %185 = vmatprep.subr.mxu0 0.0
    %186 = vmatpush2.msra.mxu0 0.0
    %187 = vmatprep.subr.mxu0 0.0
    %188 = vmatpush2.msra.mxu0 0.0
    %189 = vmatprep.subr.mxu0 0.0
    %190 = vmatpush2.msra.mxu0 0.0
    %191 = vmatprep.subr.mxu0 0.0
    %192 = vmatpush2.msra.mxu0 0.0
    %193 = vmatprep.subr.mxu0 0.0
    %194 = vmatpush2.msra.mxu0 0.0
    %195 = vmatprep.subr.mxu0 0.0
    %196 = vmatpush2.msra.mxu0 0.0
    %197 = vmatprep.subr.mxu0 0.0
    %198 = vmatpush2.msra.mxu0 0.0
    %199 = vmatprep.subr.mxu0 0.0
    %200 = vmatpush2.msra.mxu0 0.0
    %201 = vmatprep.subr.mxu0 0.0
    %202 = vmatpush2.msra.mxu0 0.0
    %203 = vmatprep.mubr.f32.mxu0 0.0
    %204 = vmatmul.mubr.f32.gmra.mxu0 %v134
    %v205 = vpop.f32.mrf.mxu0
    %v206 = vadd.f32 %v131, %v205
    %v207 = vpop.f32.mrf.mxu0
    %208 = vmatprep.mubr.f32.mxu0 0.0
    %209 = vmatmul.mubr.f32.gmra.mxu0 %v137
    %v210 = vpop.f32.mrf.mxu0
    %v211 = vadd.f32 %v131, %v210
    %v212 = vpop.f32.mrf.mxu0
    %213 = vdwg.mxu0
    %v214 = vtanh.pop %v206
    %v215 = vtanh.pop %v211
    %vm216 = vcmask 130048
    %v217 = vsel %vm216, %v214, -inf
    %v218 = vsel %vm216, %v215, -inf
    %v219 = vmax.f32 %v217, %v218
    %v220 = vsub.f32 %v214, %v219
    %v221 = vsub.f32 %v215, %v219
    %v222 = vmul.f32 %v220, 1.442695
    %v223 = vpow.pop %v222
    %v224 = vmul.f32 %v221, 1.442695
    %v225 = vpow.pop %v224
    %v226 = vsel %vm216, %v223, 0.0
    %v227 = vsel %vm216, %v225, 0.0
    %v228 = vadd.f32 %v226, %v227
    %v229 = vrcp.pop %v228
    %v230 = vmul.f32 %v223, %v229
    %v231 = vmul.f32 %v225, %v229
    %232 = vst.msk [vmem:[#allocation2] sm:$0xff] %vm216, %v230
    %233 = vst.msk [vmem:[#allocation2 + $0x8] sm:$0xff] %vm216, %v231
    // Predicated region
    $region18: #{tpu_custom_call.1} parent=1 // pred_check
      _
    $region19: #{tpu_custom_call.1} parent=1 // pred_check_branch
      %235 = sbr.rel (0) target = $region21
    $region20: #{tpu_custom_call.1} parent=1 // pred_region
      %s237 = ssub.s32 256, 256
      %238 = vsyncadd [#allocation3], %s237
      %s239 = sshll.u32 [#allocation2], 4
      %s240 = int_to_ptr.vmem [resolvable:$true] %s239
      %245 = dma.vmem_to_hbm [thread:$0]  %s240, 256, %s4, [#allocation3], 128, 128, 8
    $region21: #{tpu_custom_call.1} parent=1 // pred_fallthru
      _
    // Predicated region
    $region22: #{tpu_custom_call.1} parent=1 // pred_check
      _
    $region23: #{tpu_custom_call.1} parent=1 // pred_check_branch
      %247 = sbr.rel (0) target = $region25
    $region24: #{tpu_custom_call.1} parent=1 // pred_region
      %248 = dma.done [#allocation3], 256
    $region25: #{tpu_custom_call.1} parent=1 // pred_fallthru
      _
    %249 = vsyncpa [#allocation3], 1

</llo_original>
